<compile_context>
chip_gen: v7x
topology: tpu7x:2x2x1
jax: 0.10.0
libtpu: 0.0.40
codegen_flags: <defaults>
</compile_context>

<pallas_src>
import jax
import jax.numpy as jnp
from jax import lax
from jax.experimental import pallas as pl
from jax.experimental.pallas import tpu as pltpu


def adapter_kernel(x_ref, w1_ref, w2_ref, o_ref):
    """Fused (x @ W1^T) -> ReLU -> (@ W2^T) -> ReLU on one batch tile."""
    x = x_ref[...]          # (TB, C)
    w1 = w1_ref[...]        # (H, C)  -- PyTorch Linear layout, contract dim 1
    w2 = w2_ref[...]        # (C, H)  -- PyTorch Linear layout, contract dim 1

    # h = x @ w1^T  (contract last dims), f32 accumulation on the MXU.
    h = lax.dot_general(x, w1, (((1,), (1,)), ((), ())),
                        preferred_element_type=jnp.float32)      # (TB, H)
    h = jnp.maximum(h, 0.0).astype(x.dtype)                      # ReLU, back to input dtype

    # y = h @ w2^T  (contract last dims), f32 accumulation on the MXU.
    y = lax.dot_general(h, w2, (((1,), (1,)), ((), ())),
                        preferred_element_type=jnp.float32)      # (TB, C)
    y = jnp.maximum(y, 0.0)                                      # ReLU
    o_ref[...] = y.astype(o_ref.dtype)


def adapter_forward(x, w1, w2, *, block_b=512, vmem_limit_bytes=None):
    """x: (B, c_in); w1: (c_hid, c_in); w2: (c_in, c_hid) — PyTorch Linear layout.

    block_b: batch-tile rows. Default 512 fits v7x's 64 MiB VMEM; on v5e/v6e
    (128 MiB) pass 1024-2048 together with a larger vmem_limit_bytes.
    """
    B, C = x.shape
    H = w1.shape[0]
    assert w1.shape == (H, C) and w2.shape == (C, H)

    # Batch tile: full B if it already fits one tile, else block_b (multiple of 8).
    if B <= block_b:
        tb = B                       # block == full dim -> always layout-legal
    else:
        tb = max(8, (block_b // 8) * 8)
    grid = (pl.cdiv(B, tb),)

    return pl.pallas_call(
        adapter_kernel,
        out_shape=jax.ShapeDtypeStruct((B, C), x.dtype),
        grid_spec=pltpu.PrefetchScalarGridSpec(
            num_scalar_prefetch=0,
            grid=grid,
            in_specs=[
                # x: walk the batch dimension.
                pl.BlockSpec((tb, C), lambda i: (i, 0)),
                # Weights: constant index_map -> stay resident in VMEM across grid.
                pl.BlockSpec((H, C), lambda i: (0, 0)),
                pl.BlockSpec((C, H), lambda i: (0, 0)),
            ],
            out_specs=pl.BlockSpec((tb, C), lambda i: (i, 0)),
        ),
        compiler_params=pltpu.CompilerParams(
            dimension_semantics=("parallel",),   # independent batch rows -> megacore-shardable
            vmem_limit_bytes=vmem_limit_bytes,
        ),
    )(x, w1, w2)


def _ref_adapter(x, w1, w2):
    """Pure-JAX reference with the same mixed-precision semantics as the kernel."""
    h = lax.dot_general(x, w1, (((1,), (1,)), ((), ())),
                        preferred_element_type=jnp.float32)
    h = jnp.maximum(h, 0.0).astype(x.dtype)
    y = lax.dot_general(h, w2, (((1,), (1,)), ((), ())),
                        preferred_element_type=jnp.float32)
    return jnp.maximum(y, 0.0).astype(x.dtype)


if __name__ == "__main__":
    key = jax.random.PRNGKey(0)

    # ---- Case 1: module-default toy config (c_in=32, reduction=4, batch=8), f32.
    c_in, reduction, batch = 32, 4, 8
    c_hid = c_in // reduction
    kx, k1, k2, kx2, k3, k4 = jax.random.split(key, 6)

    x = jax.random.normal(kx, (batch, c_in), dtype=jnp.float32)
    b1 = 1.0 / (c_in ** 0.5)
    b2 = 1.0 / (c_hid ** 0.5)
    w1 = jax.random.uniform(k1, (c_hid, c_in), jnp.float32, -b1, b1)   # Linear(c_in, c_hid)
    w2 = jax.random.uniform(k2, (c_in, c_hid), jnp.float32, -b2, b2)   # Linear(c_hid, c_in)

    y = adapter_forward(x, w1, w2)
    jax.block_until_ready(y)
    ref = jnp.maximum(jnp.maximum(x @ w1.T, 0.0) @ w2.T, 0.0)
    assert y.shape == (batch, c_in)
    assert jnp.allclose(y, ref, atol=1e-5, rtol=1e-5)

    # ---- Case 2: batch-tiled, lane-aligned bf16 config (c_in=256, reduction=4, batch=1024).
    c_in2, reduction2, batch2 = 256, 4, 1024
    c_hid2 = c_in2 // reduction2
    x2 = jax.random.normal(kx2, (batch2, c_in2), dtype=jnp.float32).astype(jnp.bfloat16)
    b1 = 1.0 / (c_in2 ** 0.5)
    b2 = 1.0 / (c_hid2 ** 0.5)
    w1b = jax.random.uniform(k3, (c_hid2, c_in2), jnp.float32, -b1, b1).astype(jnp.bfloat16)
    w2b = jax.random.uniform(k4, (c_in2, c_hid2), jnp.float32, -b2, b2).astype(jnp.bfloat16)

    y2 = adapter_forward(x2, w1b, w2b, block_b=256)
    jax.block_until_ready(y2)
    ref2 = _ref_adapter(x2, w1b, w2b)
    assert y2.shape == (batch2, c_in2)
    assert jnp.allclose(y2.astype(jnp.float32), ref2.astype(jnp.float32),
                        atol=1e-2, rtol=1e-2)

    print("KERNEL_OK")
</pallas_src>

<mosaic_0001>
module attributes {stable_mosaic.version = 11 : i64} {
  func.func @adapter_kernel(%arg0: i32, %arg1: memref<8x32xf32, #tpu.memory_space<vmem>>, %arg2: memref<8x32xf32, #tpu.memory_space<vmem>>, %arg3: memref<32x8xf32, #tpu.memory_space<vmem>>, %arg4: memref<8x32xf32, #tpu.memory_space<vmem>>) attributes {dimension_semantics = [#tpu.dimension_semantics<parallel>], iteration_bounds = array<i64: 1>, scalar_prefetch = 0 : i64, scratch_operands = 0 : i64, tpu.core_type = #tpu.core_type<tc>, window_params = [{transform_indices = @transform_0, window_bounds = array<i64: 8, 32>}, {pipeline_mode = #tpu.pipeline_mode<synchronous>, transform_indices = @transform_1, window_bounds = array<i64: 8, 32>}, {pipeline_mode = #tpu.pipeline_mode<synchronous>, transform_indices = @transform_2, window_bounds = array<i64: 32, 8>}, {transform_indices = @transform_3, window_bounds = array<i64: 8, 32>}]} {
    %c0 = arith.constant 0 : index
    %c0_0 = arith.constant 0 : index
    %0 = vector.load %arg1[%c0, %c0_0] : memref<8x32xf32, #tpu.memory_space<vmem>>, vector<8x32xf32>
    %c0_1 = arith.constant 0 : index
    %c0_2 = arith.constant 0 : index
    %1 = vector.load %arg2[%c0_1, %c0_2] : memref<8x32xf32, #tpu.memory_space<vmem>>, vector<8x32xf32>
    %c0_3 = arith.constant 0 : index
    %c0_4 = arith.constant 0 : index
    %2 = vector.load %arg3[%c0_3, %c0_4] : memref<32x8xf32, #tpu.memory_space<vmem>>, vector<32x8xf32>
    %cst = arith.constant dense<0.000000e+00> : vector<8x8xf32>
    %3 = tpu.matmul %0, %1, %cst {dimension_numbers = #tpu.dot_dimension_numbers<[1], [1], [0], [0], [0, 0, 1, 0], [], []>} : vector<8x32xf32>, vector<8x32xf32>, vector<8x8xf32> -> vector<8x8xf32>
    %cst_5 = arith.constant 0.000000e+00 : f32
    %4 = vector.broadcast %cst_5 : f32 to vector<8x8xf32>
    %5 = arith.maximumf %3, %4 : vector<8x8xf32>
    %cst_6 = arith.constant dense<0.000000e+00> : vector<8x32xf32>
    %6 = tpu.matmul %5, %2, %cst_6 {dimension_numbers = #tpu.dot_dimension_numbers<[1], [1], [0], [0], [0, 0, 1, 0], [], []>} : vector<8x8xf32>, vector<32x8xf32>, vector<8x32xf32> -> vector<8x32xf32>
    %cst_7 = arith.constant 0.000000e+00 : f32
    %7 = vector.broadcast %cst_7 : f32 to vector<8x32xf32>
    %8 = arith.maximumf %6, %7 : vector<8x32xf32>
    %c0_8 = arith.constant 0 : index
    %c0_9 = arith.constant 0 : index
    %9 = vector.load %arg4[%c0_8, %c0_9] : memref<8x32xf32, #tpu.memory_space<vmem>>, vector<8x32xf32>
    tpu.vector_store %arg4[%c0_8, %c0_9], %8 {strides = array<i32>} : memref<8x32xf32, #tpu.memory_space<vmem>>, vector<8x32xf32>,
    return
  }
  func.func @transform_0(%arg0: i32) -> (i32, i32) {
    %c0_i32 = arith.constant 0 : i32
    %c0_i32_0 = arith.constant 0 : i32
    return %arg0, %c0_i32 : i32, i32
  }
  func.func @transform_1(%arg0: i32) -> (i32, i32) {
    %c0_i32 = arith.constant 0 : i32
    %c0_i32_0 = arith.constant 0 : i32
    %c0_i32_1 = arith.constant 0 : i32
    return %c0_i32, %c0_i32_0 : i32, i32
  }
  func.func @transform_2(%arg0: i32) -> (i32, i32) {
    %c0_i32 = arith.constant 0 : i32
    %c0_i32_0 = arith.constant 0 : i32
    %c0_i32_1 = arith.constant 0 : i32
    return %c0_i32, %c0_i32_0 : i32, i32
  }
  func.func @transform_3(%arg0: i32) -> (i32, i32) {
    %c0_i32 = arith.constant 0 : i32
    %c0_i32_0 = arith.constant 0 : i32
    return %arg0, %c0_i32 : i32, i32
  }
}

</mosaic_0001>

<llo_original>
// kernel: tpu_custom_call.1
$region0: #{tpu_custom_call.1}
  #allocation0 [shape = 'u32[]', space=smem, size = 0x4, offset = 0x4, fixed_abs, tag = 'smem constant byte address 0x4 - core index']
  #allocation1 [shape = 'u32[144,128]{1,0:T(1,128)}', space=vmem, size = 0x12000, scoped, tag = 'internal scratch']
  %s0 = inlined_call_operand.vmem [shape: f32[8,32], index: 0, kind: input, shape index: {}]
  %s1 = inlined_call_operand.vmem [shape: f32[8,32], index: 1, kind: input, shape index: {}]
  %s2 = inlined_call_operand.vmem [shape: f32[32,8], index: 2, kind: input, shape index: {}]
  %s3 = inlined_call_operand.hbm [shape: f32[8,32], index: 3, kind: output, shape index: {}]
  %s4 = sld [smem:[#allocation0]]
  $region22: #{tpu_custom_call.1} parent=0
    _
  %s6 = ssub.s32 1, %s4
  %s7 = scalar_select 0, %s6, %s4
  $region1: #{tpu_custom_call.1} parent=0
    #allocation2 [shape = 'u8[4096]{0}', space=vmem, size = 0x1000, scoped, tag = 'output window, operand 0, single buffered']
    #allocation3 [shape = 's32[1]{0}', space=sflag, size = 0x4, scoped, tag = 'scoped memory for tpu_custom_call.1']
    %8 = vsyncpa [#allocation3], 0
    // Predicated region
    $region2: #{tpu_custom_call.1} parent=1 // pred_check
      _
    $region3: #{tpu_custom_call.1} parent=1 // pred_check_branch
      %10 = sbr.rel (0) target = $region5
    $region4: #{tpu_custom_call.1} parent=1 // pred_region
      _
    $region5: #{tpu_custom_call.1} parent=1 // pred_fallthru
      _
    // Predicated region
    $region6: #{tpu_custom_call.1} parent=1 // pred_check
      _
    $region7: #{tpu_custom_call.1} parent=1 // pred_check_branch
      %12 = sbr.rel (0) target = $region9
    $region8: #{tpu_custom_call.1} parent=1 // pred_region
      _
    $region9: #{tpu_custom_call.1} parent=1 // pred_fallthru
      _
    // Predicated region
    $region10: #{tpu_custom_call.1} parent=1 // pred_check
      _
    $region11: #{tpu_custom_call.1} parent=1 // pred_check_branch
      %14 = sbr.rel (0) target = $region13
    $region12: #{tpu_custom_call.1} parent=1 // pred_region
      _
    $region13: #{tpu_custom_call.1} parent=1 // pred_fallthru
      _
    %v15 = vld [vmem:[%s0] sm:$0xff]
    %v16 = vld [vmem:[%s1] sm:$0xff]
    %v17 = vld [vmem:[%s2] sm:$0xff]
    %v18 = vld [vmem:[%s2 + $0x8] sm:$0xff]
    %v19 = vld [vmem:[%s2 + $0x10] sm:$0xff]
    %v20 = vld [vmem:[%s2 + $0x18] sm:$0xff]
    %vm21 = vcmask 261120
    %v23 = vsel %vm21, %v15, 0
    %v26 = vsel %vm21, %v16, 0
    %28 = vmatprep.subr.mxu0 0.0
    %29 = vmatpush1.xpose.msra.mxu0 %v26
    %30 = vmatprep.subr.mxu0 0.0
    %31 = vmatpush1.xpose.msra.mxu0 0.0
    %32 = vmatprep.subr.mxu0 0.0
    %33 = vmatpush1.xpose.msra.mxu0 0.0
    %34 = vmatprep.subr.mxu0 0.0
    %35 = vmatpush1.xpose.msra.mxu0 0.0
    %36 = vmatprep.subr.mxu0 0.0
    %37 = vmatpush1.xpose.msra.mxu0 0.0
    %38 = vmatprep.subr.mxu0 0.0
    %39 = vmatpush1.xpose.msra.mxu0 0.0
    %40 = vmatprep.subr.mxu0 0.0
    %41 = vmatpush1.xpose.msra.mxu0 0.0
    %42 = vmatprep.subr.mxu0 0.0
    %43 = vmatpush1.xpose.msra.mxu0 0.0
    %44 = vmatprep.subr.mxu0 0.0
    %45 = vmatpush1.xpose.msra.mxu0 0.0
    %46 = vmatprep.subr.mxu0 0.0
    %47 = vmatpush1.xpose.msra.mxu0 0.0
    %48 = vmatprep.subr.mxu0 0.0
    %49 = vmatpush1.xpose.msra.mxu0 0.0
    %50 = vmatprep.subr.mxu0 0.0
    %51 = vmatpush1.xpose.msra.mxu0 0.0
    %52 = vmatprep.subr.mxu0 0.0
    %53 = vmatpush1.xpose.msra.mxu0 0.0
    %54 = vmatprep.subr.mxu0 0.0
    %55 = vmatpush1.xpose.msra.mxu0 0.0
    %56 = vmatprep.subr.mxu0 0.0
    %57 = vmatpush1.xpose.msra.mxu0 0.0
    %58 = vmatprep.subr.mxu0 0.0
    %59 = vmatpush1.xpose.msra.mxu0 0.0
    %60 = vmatprep.subr.mxu0 0.0
    %61 = vmatpush1.xpose.msra.mxu0 0.0
    %62 = vmatprep.subr.mxu0 0.0
    %63 = vmatpush1.xpose.msra.mxu0 0.0
    %64 = vmatprep.subr.mxu0 0.0
    %65 = vmatpush1.xpose.msra.mxu0 0.0
    %66 = vmatprep.subr.mxu0 0.0
    %67 = vmatpush1.xpose.msra.mxu0 0.0
    %68 = vmatprep.subr.mxu0 0.0
    %69 = vmatpush1.xpose.msra.mxu0 0.0
    %70 = vmatprep.subr.mxu0 0.0
    %71 = vmatpush1.xpose.msra.mxu0 0.0
    %72 = vmatprep.subr.mxu0 0.0
    %73 = vmatpush1.xpose.msra.mxu0 0.0
    %74 = vmatprep.subr.mxu0 0.0
    %75 = vmatpush1.xpose.msra.mxu0 0.0
    %76 = vmatprep.subr.mxu0 0.0
    %77 = vmatpush1.xpose.msra.mxu0 0.0
    %78 = vmatprep.subr.mxu0 0.0
    %79 = vmatpush1.xpose.msra.mxu0 0.0
    %80 = vmatprep.subr.mxu0 0.0
    %81 = vmatpush1.xpose.msra.mxu0 0.0
    %82 = vmatprep.subr.mxu0 0.0
    %83 = vmatpush1.xpose.msra.mxu0 0.0
    %84 = vmatprep.subr.mxu0 0.0
    %85 = vmatpush1.xpose.msra.mxu0 0.0
    %86 = vmatprep.subr.mxu0 0.0
    %87 = vmatpush1.xpose.msra.mxu0 0.0
    %88 = vmatprep.subr.mxu0 0.0
    %89 = vmatpush1.xpose.msra.mxu0 0.0
    %90 = vmatprep.subr.mxu0 0.0
    %91 = vmatpush1.xpose.msra.mxu0 0.0
    %92 = vmatprep.mubr.f32.mxu0 0.0
    %93 = vmatmul.mubr.f32.gmra.mrb[0].mxu0 %v23
    %v94 = vpop.f32.mrb[0].mxu0
    %v95 = vadd.f32 0.0, %v94
    %v96 = vpop.f32.mrb[0].mxu0
    %97 = vdwg.mxu0
    %v98 = vmax.f32 %v95, 0.0
    %vm99 = vcmask 64512
    %v101 = vsel %vm99, %v98, 0
    %v104 = vsel %vm99, %v17, 0
    %v107 = vsel %vm99, %v18, 0
    %v110 = vsel %vm99, %v19, 0
    %v113 = vsel %vm99, %v20, 0
    %115 = vmatprep.subr.mxu0 0.0
    %116 = vmatpush1.xpose.msra.mxu0 %v104
    %117 = vmatprep.subr.mxu0 0.0
    %118 = vmatpush1.xpose.msra.mxu0 %v107
    %119 = vmatprep.subr.mxu0 0.0
    %120 = vmatpush1.xpose.msra.mxu0 %v110
    %121 = vmatprep.subr.mxu0 0.0
    %122 = vmatpush1.xpose.msra.mxu0 %v113
    %123 = vmatprep.subr.mxu0 0.0
    %124 = vmatpush1.xpose.msra.mxu0 0.0
    %125 = vmatprep.subr.mxu0 0.0
    %126 = vmatpush1.xpose.msra.mxu0 0.0
    %127 = vmatprep.subr.mxu0 0.0
    %128 = vmatpush1.xpose.msra.mxu0 0.0
    %129 = vmatprep.subr.mxu0 0.0
    %130 = vmatpush1.xpose.msra.mxu0 0.0
    %131 = vmatprep.subr.mxu0 0.0
    %132 = vmatpush1.xpose.msra.mxu0 0.0
    %133 = vmatprep.subr.mxu0 0.0
    %134 = vmatpush1.xpose.msra.mxu0 0.0
    %135 = vmatprep.subr.mxu0 0.0
    %136 = vmatpush1.xpose.msra.mxu0 0.0
    %137 = vmatprep.subr.mxu0 0.0
    %138 = vmatpush1.xpose.msra.mxu0 0.0
    %139 = vmatprep.subr.mxu0 0.0
    %140 = vmatpush1.xpose.msra.mxu0 0.0
    %141 = vmatprep.subr.mxu0 0.0
    %142 = vmatpush1.xpose.msra.mxu0 0.0
    %143 = vmatprep.subr.mxu0 0.0
    %144 = vmatpush1.xpose.msra.mxu0 0.0
    %145 = vmatprep.subr.mxu0 0.0
    %146 = vmatpush1.xpose.msra.mxu0 0.0
    %147 = vmatprep.subr.mxu0 0.0
    %148 = vmatpush1.xpose.msra.mxu0 0.0
    %149 = vmatprep.subr.mxu0 0.0
    %150 = vmatpush1.xpose.msra.mxu0 0.0
    %151 = vmatprep.subr.mxu0 0.0
    %152 = vmatpush1.xpose.msra.mxu0 0.0
    %153 = vmatprep.subr.mxu0 0.0
    %154 = vmatpush1.xpose.msra.mxu0 0.0
    %155 = vmatprep.subr.mxu0 0.0
    %156 = vmatpush1.xpose.msra.mxu0 0.0
    %157 = vmatprep.subr.mxu0 0.0
    %158 = vmatpush1.xpose.msra.mxu0 0.0
    %159 = vmatprep.subr.mxu0 0.0
    %160 = vmatpush1.xpose.msra.mxu0 0.0
    %161 = vmatprep.subr.mxu0 0.0
    %162 = vmatpush1.xpose.msra.mxu0 0.0
    %163 = vmatprep.subr.mxu0 0.0
    %164 = vmatpush1.xpose.msra.mxu0 0.0
    %165 = vmatprep.subr.mxu0 0.0
    %166 = vmatpush1.xpose.msra.mxu0 0.0
    %167 = vmatprep.subr.mxu0 0.0
    %168 = vmatpush1.xpose.msra.mxu0 0.0
    %169 = vmatprep.subr.mxu0 0.0
    %170 = vmatpush1.xpose.msra.mxu0 0.0
    %171 = vmatprep.subr.mxu0 0.0
    %172 = vmatpush1.xpose.msra.mxu0 0.0
    %173 = vmatprep.subr.mxu0 0.0
    %174 = vmatpush1.xpose.msra.mxu0 0.0
    %175 = vmatprep.subr.mxu0 0.0
    %176 = vmatpush1.xpose.msra.mxu0 0.0
    %177 = vmatprep.subr.mxu0 0.0
    %178 = vmatpush1.xpose.msra.mxu0 0.0
    %179 = vmatprep.mubr.f32.mxu0 0.0
    %180 = vmatmul.mubr.f32.gmra.mrb[0].mxu0 %v101
    %v181 = vpop.f32.mrb[0].mxu0
    %v182 = vadd.f32 0.0, %v181
    %v183 = vpop.f32.mrb[0].mxu0
    %184 = vdwg.mxu0
    %v185 = vmax.f32 %v182, 0.0
    %186 = vst.msk [vmem:[#allocation2] sm:$0xff] %vm21, %v185
    // Predicated region
    $region14: #{tpu_custom_call.1} parent=1 // pred_check
      _
    $region15: #{tpu_custom_call.1} parent=1 // pred_check_branch
      %188 = sbr.rel (0) target = $region17
    $region16: #{tpu_custom_call.1} parent=1 // pred_region
      %s190 = ssub.s32 128, 128
      %191 = vsyncadd [#allocation3], %s190
      %s193 = sshll.u32 [#allocation2], 4
      %s194 = int_to_ptr.vmem [resolvable:$true] %s193
      %196 = dma.vmem_to_hbm [thread:$0]  %s194, 128, %s3, [#allocation3]
    $region17: #{tpu_custom_call.1} parent=1 // pred_fallthru
      _
    // Predicated region
    $region18: #{tpu_custom_call.1} parent=1 // pred_check
      _
    $region19: #{tpu_custom_call.1} parent=1 // pred_check_branch
      %198 = sbr.rel (0) target = $region21
    $region20: #{tpu_custom_call.1} parent=1 // pred_region
      %199 = dma.done [#allocation3], 128
    $region21: #{tpu_custom_call.1} parent=1 // pred_fallthru
      _
    %200 = vsyncpa [#allocation3], 1

</llo_original>
